<compile_context>
chip_gen: v7x
topology: tpu7x:2x2x1
jax: 0.10.0
libtpu: 0.0.40
codegen_flags: <defaults>
</compile_context>

<pallas_src>
import functools

import jax
import jax.numpy as jnp
from jax import lax
from jax.experimental import pallas as pl
from jax.experimental.pallas import tpu as pltpu

_LANE = 128
_SUBLANE = 8
_TILE_BUDGET = 8 * 1024 * 1024     # ~8 MiB of input per grid step (double-buffered)
_VMEM_LIMIT = 40 * 1024 * 1024     # scoped-VMEM request; safe on v5e/v6e/v7x


def _pool_kernel_single(x_ref, out_ref, *, hw):
    """Whole HW extent in one tile.  grid = (row blocks,).  No scratch."""
    x = x_ref[...]                                            # (row_block, HW)
    s = jnp.sum(x.astype(jnp.float32), axis=-1, keepdims=True)
    m = jnp.max(x, axis=-1, keepdims=True)
    out_ref[:, 0:1] = (s * jnp.float32(1.0 / hw)).astype(out_ref.dtype)
    out_ref[:, 1:2] = m.astype(out_ref.dtype)


def _pool_kernel_multi(x_ref, out_ref, sum_acc, max_acc, *,
                       hw, hw_block, mask_tail):
    """HW tiled on a trailing 'arbitrary' axis.  grid = (row blocks, hw blocks)."""
    k = pl.program_id(1)
    nk = pl.num_programs(1)

    @pl.when(k == 0)
    def _init():
        sum_acc[...] = jnp.zeros_like(sum_acc)
        max_acc[...] = jnp.full_like(max_acc, -jnp.inf)

    def _accumulate(masked):
        x = x_ref[...]                                        # (row_block, hw_block)
        xs = x.astype(jnp.float32)                            # sum accumulates in f32
        if masked:
            # Padded HW tail: 0 for sum, -inf for max (both folds run in f32
            # here; this branch only executes on the last reduction step).
            col = lax.broadcasted_iota(jnp.int32, x.shape, 1)
            valid = (k * hw_block + col) < hw
            xsum = jnp.where(valid, xs, jnp.float32(0.0))
            xmax = jnp.where(valid, xs, jnp.float32(-jnp.inf))
        else:
            xsum = xs
            xmax = x                                          # max stays in input dtype
        # VPU fold across static 128-lane chunks: whole-vreg slices, VALU-only.
        # The cross-lane (XLU) reduce is deferred to the finalize step.
        n_chunks = hw_block // _LANE
        psum = xsum[:, :_LANE]
        pmax = xmax[:, :_LANE]
        for c in range(1, n_chunks):
            lo = c * _LANE
            psum = psum + xsum[:, lo:lo + _LANE]
            pmax = jnp.maximum(pmax, xmax[:, lo:lo + _LANE])
        sum_acc[...] += psum                                  # (row_block, 128) f32
        max_acc[...] = jnp.maximum(max_acc[...], pmax.astype(jnp.float32))

    is_last = k == nk - 1

    @pl.when(k < nk - 1)
    def _steady():
        _accumulate(masked=False)

    @pl.when(is_last)
    def _last():
        _accumulate(masked=mask_tail)
        # Finalize once per row block: small XLU transpose, then a lane-dense
        # (1, row_block) store for each of avg / max.
        inv_hw = jnp.float32(1.0 / hw)
        avg = jnp.sum(sum_acc[...].T, axis=0, keepdims=True) * inv_hw
        mx = jnp.max(max_acc[...].T, axis=0, keepdims=True)
        out_ref[0:1, :] = avg.astype(out_ref.dtype)
        out_ref[1:2, :] = mx.astype(out_ref.dtype)


def _global_avg_max(x2d):
    """x2d: (R, HW) float -> (avg (R,), max (R,)) from one Pallas kernel."""
    R, HW = x2d.shape
    dtype = x2d.dtype
    assert jnp.issubdtype(dtype, jnp.floating), "floating-point input expected"
    itemsize = jnp.dtype(dtype).itemsize

    # Max reduction-axis tile: lane-aligned, ~32 KiB of lanes per row
    # (8192 lanes for f32, 16384 for bf16).
    hw_block_max = max(_LANE, ((32 * 1024 // itemsize) // _LANE) * _LANE)

    if HW <= hw_block_max:
        # ---------------- single reduction step, no scratch ----------------
        padded_row_bytes = pl.cdiv(HW, _LANE) * _LANE * itemsize   # VMEM footprint/row
        rows = max(_SUBLANE, _TILE_BUDGET // padded_row_bytes)
        if rows >= R:
            row_block = R                       # full extent (any R allowed)
        else:
            row_block = max(_SUBLANE, (rows // _SUBLANE) * _SUBLANE)
        n_i = pl.cdiv(R, row_block)

        out = pl.pallas_call(
            functools.partial(_pool_kernel_single, hw=HW),
            out_shape=jax.ShapeDtypeStruct((R, 2), dtype),
            grid_spec=pltpu.PrefetchScalarGridSpec(
                num_scalar_prefetch=0,
                grid=(n_i,),
                in_specs=[pl.BlockSpec((row_block, HW), lambda i: (i, 0))],
                out_specs=pl.BlockSpec((row_block, 2), lambda i: (i, 0)),
            ),
            compiler_params=pltpu.CompilerParams(
                dimension_semantics=("parallel",),
                vmem_limit_bytes=_VMEM_LIMIT),
        )(x2d)
        return out[:, 0], out[:, 1]

    # ------------------- multi-step reduction over HW ----------------------
    hw_block = hw_block_max                     # multiple of 128
    n_k = pl.cdiv(HW, hw_block)                 # >= 2 here
    mask_tail = (HW % hw_block) != 0

    rows = max(_LANE, _TILE_BUDGET // (hw_block * itemsize))
    if rows >= R:
        row_block = R                           # full extent (any R allowed)
    else:
        row_block = max(_LANE, (rows // _LANE) * _LANE)   # 128-aligned: lane-dense out
    n_i = pl.cdiv(R, row_block)

    out = pl.pallas_call(
        functools.partial(_pool_kernel_multi, hw=HW, hw_block=hw_block,
                          mask_tail=mask_tail),
        out_shape=jax.ShapeDtypeStruct((2, R), dtype),     # row 0 = avg, row 1 = max
        grid_spec=pltpu.PrefetchScalarGridSpec(
            num_scalar_prefetch=0,
            grid=(n_i, n_k),
            in_specs=[pl.BlockSpec((row_block, hw_block), lambda i, k: (i, k))],
            out_specs=pl.BlockSpec((2, row_block), lambda i, k: (0, i)),
            scratch_shapes=[
                pltpu.VMEM((row_block, _LANE), jnp.float32),   # running sum partials
                pltpu.VMEM((row_block, _LANE), jnp.float32),   # running max partials
            ],
        ),
        compiler_params=pltpu.CompilerParams(
            dimension_semantics=("parallel", "arbitrary"),
            vmem_limit_bytes=_VMEM_LIMIT),
    )(x2d)
    return out[0, :], out[1, :]


def select_adaptive_pool2d(x, pool_type="avg", output_size=1):
    """JAX/Pallas equivalent of SelectAdaptivePool2d.forward for NCHW input."""
    assert output_size == 1, "only global pooling (output_size=1) is supported"
    N, C, H, W = x.shape
    avg, mx = _global_avg_max(x.reshape(N * C, H * W))
    avg = avg.reshape(N, C, 1, 1)
    mx = mx.reshape(N, C, 1, 1)
    if pool_type == "avg":
        return avg
    elif pool_type == "max":
        return mx
    elif pool_type == "avgmax":
        return 0.5 * (avg + mx)
    elif pool_type == "catavgmax":
        return jnp.concatenate((avg, mx), axis=1)
    else:
        raise ValueError("Invalid pool type: %s" % pool_type)


if __name__ == "__main__":
    key = jax.random.PRNGKey(0)

    # Small shape consistent with the module (NCHW feature map) -> single-step path.
    N, C, H, W = 2, 4, 16, 16
    x = jax.random.normal(key, (N, C, H, W), dtype=jnp.float32)

    outs = {pt: jax.block_until_ready(select_adaptive_pool2d(x, pool_type=pt))
            for pt in ("avg", "max", "avgmax", "catavgmax")}

    ref_avg = jnp.mean(x, axis=(2, 3), keepdims=True)
    ref_max = jnp.max(x, axis=(2, 3), keepdims=True)
    assert outs["avg"].shape == (N, C, 1, 1)
    assert outs["max"].shape == (N, C, 1, 1)
    assert outs["avgmax"].shape == (N, C, 1, 1)
    assert outs["catavgmax"].shape == (N, 2 * C, 1, 1)
    assert jnp.allclose(outs["avg"], ref_avg, atol=1e-5)
    assert jnp.allclose(outs["max"], ref_max, atol=1e-5)
    assert jnp.allclose(outs["avgmax"], 0.5 * (ref_avg + ref_max), atol=1e-5)
    assert jnp.allclose(outs["catavgmax"],
                        jnp.concatenate((ref_avg, ref_max), axis=1), atol=1e-5)

    # Second shape exercising the multi-step accumulation + tail-mask path
    # (HW = 96*96 = 9216 spans two 8192-lane reduction blocks in f32).
    x2 = jax.random.normal(jax.random.PRNGKey(1), (2, 8, 96, 96), dtype=jnp.float32)
    out_avg2 = jax.block_until_ready(select_adaptive_pool2d(x2, pool_type="avg"))
    out_max2 = jax.block_until_ready(select_adaptive_pool2d(x2, pool_type="max"))
    assert jnp.allclose(out_avg2, jnp.mean(x2, axis=(2, 3), keepdims=True), atol=1e-4)
    assert jnp.allclose(out_max2, jnp.max(x2, axis=(2, 3), keepdims=True), atol=1e-5)

    # bf16 multi-step path (HW = 132*132 = 17424 spans two 16384-lane blocks).
    x3 = jax.random.normal(jax.random.PRNGKey(2), (2, 8, 132, 132),
                           dtype=jnp.bfloat16)
    out_avg3 = jax.block_until_ready(select_adaptive_pool2d(x3, pool_type="avg"))
    out_max3 = jax.block_until_ready(select_adaptive_pool2d(x3, pool_type="max"))
    ref_avg3 = jnp.mean(x3.astype(jnp.float32), axis=(2, 3), keepdims=True)
    assert jnp.allclose(out_avg3.astype(jnp.float32), ref_avg3, atol=1e-3)
    assert jnp.allclose(out_max3, jnp.max(x3, axis=(2, 3), keepdims=True))

    print("KERNEL_OK")
</pallas_src>

<mosaic_0001>
module attributes {stable_mosaic.version = 11 : i64} {
  func.func @_pool_kernel_single(%arg0: i32, %arg1: memref<8x256xf32, #tpu.memory_space<vmem>>, %arg2: memref<8x2xf32, #tpu.memory_space<vmem>>) attributes {dimension_semantics = [#tpu.dimension_semantics<parallel>], iteration_bounds = array<i64: 1>, scalar_prefetch = 0 : i64, scratch_operands = 0 : i64, tpu.core_type = #tpu.core_type<tc>, window_params = [{transform_indices = @transform_0, window_bounds = array<i64: 8, 256>}, {transform_indices = @transform_1, window_bounds = array<i64: 8, 2>}]} {
    %c0 = arith.constant 0 : index
    %c0_0 = arith.constant 0 : index
    %0 = vector.load %arg1[%c0, %c0_0] : memref<8x256xf32, #tpu.memory_space<vmem>>, vector<8x256xf32>
    %cst = arith.constant dense<0.000000e+00> : vector<8xf32>
    %1 = vector.multi_reduction <add>, %0, %cst [1] : vector<8x256xf32> to vector<8xf32>
    %2 = vector.shape_cast %1 : vector<8xf32> to vector<8x1xf32>
    %cst_1 = arith.constant dense<0xFF800000> : vector<8xf32>
    %3 = vector.multi_reduction <maximumf>, %0, %cst_1 [1] : vector<8x256xf32> to vector<8xf32>
    %4 = vector.shape_cast %3 : vector<8xf32> to vector<8x1xf32>
    %cst_2 = arith.constant 3.906250e-03 : f32
    %5 = vector.broadcast %cst_2 : f32 to vector<8x1xf32>
    %6 = arith.mulf %2, %5 : vector<8x1xf32>
    %c0_3 = arith.constant 0 : index
    %c0_4 = arith.constant 0 : index
    %7 = vector.load %arg2[%c0_3, %c0_4] : memref<8x2xf32, #tpu.memory_space<vmem>>, vector<8x1xf32>
    tpu.vector_store %arg2[%c0_3, %c0_4], %6 {strides = array<i32>} : memref<8x2xf32, #tpu.memory_space<vmem>>, vector<8x1xf32>,
    %c0_5 = arith.constant 0 : index
    %c1 = arith.constant 1 : index
    %8 = vector.load %arg2[%c0_5, %c1] : memref<8x2xf32, #tpu.memory_space<vmem>>, vector<8x1xf32>
    tpu.vector_store %arg2[%c0_5, %c1], %4 {strides = array<i32>} : memref<8x2xf32, #tpu.memory_space<vmem>>, vector<8x1xf32>,
    return
  }
  func.func @transform_0(%arg0: i32) -> (i32, i32) {
    %c0_i32 = arith.constant 0 : i32
    %c0_i32_0 = arith.constant 0 : i32
    return %arg0, %c0_i32 : i32, i32
  }
  func.func @transform_1(%arg0: i32) -> (i32, i32) {
    %c0_i32 = arith.constant 0 : i32
    %c0_i32_0 = arith.constant 0 : i32
    return %arg0, %c0_i32 : i32, i32
  }
}

</mosaic_0001>

<llo_original>
// kernel: tpu_custom_call.1
$region0: #{tpu_custom_call.1}
  #allocation0 [shape = 'u32[]', space=smem, size = 0x4, offset = 0x4, fixed_abs, tag = 'smem constant byte address 0x4 - core index']
  #allocation1 [shape = 'u32[144,128]{1,0:T(1,128)}', space=vmem, size = 0x12000, scoped, tag = 'internal scratch']
  %s0 = inlined_call_operand.hbm [shape: f32[8,256], index: 0, kind: input, shape index: {}]
  %s1 = inlined_call_operand.vmem [shape: f32[8,2], index: 1, kind: output, shape index: {}]
  %s2 = sld [smem:[#allocation0]]
  $region18: #{tpu_custom_call.1} parent=0
    _
  %s4 = ssub.s32 1, %s2
  %s5 = scalar_select 0, %s4, %s2
  $region1: #{tpu_custom_call.1} parent=0
    #allocation2 [shape = 'u8[8192]{0}', space=vmem, size = 0x2000, scoped, tag = 'input window, operand 0, single buffered']
    #allocation3 [shape = 's32[1]{0}', space=sflag, size = 0x4, scoped, tag = 'scoped memory for tpu_custom_call.1']
    %6 = vsyncpa [#allocation3], 0
    // Predicated region
    $region2: #{tpu_custom_call.1} parent=1 // pred_check
      _
    $region3: #{tpu_custom_call.1} parent=1 // pred_check_branch
      %8 = sbr.rel (0) target = $region5
    $region4: #{tpu_custom_call.1} parent=1 // pred_region
      %s10 = ssub.s32 256, 256
      %11 = vsyncadd [#allocation3], %s10
      %s13 = sshll.u32 [#allocation2], 4
      %s14 = int_to_ptr.vmem [resolvable:$true] %s13
      %16 = dma.hbm_to_vmem [thread:$0]  %s0, 256, %s14, [#allocation3]
    $region5: #{tpu_custom_call.1} parent=1 // pred_fallthru
      _
    // Predicated region
    $region6: #{tpu_custom_call.1} parent=1 // pred_check
      _
    $region7: #{tpu_custom_call.1} parent=1 // pred_check_branch
      %18 = sbr.rel (0) target = $region9
    $region8: #{tpu_custom_call.1} parent=1 // pred_region
      %19 = dma.done [#allocation3], 256
    $region9: #{tpu_custom_call.1} parent=1 // pred_fallthru
      _
    %v20 = vld [vmem:[#allocation2] sm:$0xff]
    %v21 = vld [vmem:[#allocation2 + $0x8] sm:$0xff]
    %v22 = vadd.f32 %v20, %v21
    %23 = vadd.xlane.f32.xlu0 %v22
    %v24 = vpop.xlane.xlu0 %23
    %v25 = vmax.f32 %v20, %v21
    %26 = vmax.xlane.f32.xlu0 %v25
    %v27 = vpop.xlane.xlu0 %26
    %v28 = vmul.f32 %v24, 0.00390625
    %vm29 = vcmask 7168
    %30 = vst.msk [vmem:[%s1] sm:$0xff] %vm29, %v28
    %vm31 = vcmask 15368
    %32 = vst.msk [vmem:[%s1] sm:$0xff] %vm31, %v27
    // Predicated region
    $region10: #{tpu_custom_call.1} parent=1 // pred_check
      _
    $region11: #{tpu_custom_call.1} parent=1 // pred_check_branch
      %34 = sbr.rel (0) target = $region13
    $region12: #{tpu_custom_call.1} parent=1 // pred_region
      _
    $region13: #{tpu_custom_call.1} parent=1 // pred_fallthru
      _
    // Predicated region
    $region14: #{tpu_custom_call.1} parent=1 // pred_check
      _
    $region15: #{tpu_custom_call.1} parent=1 // pred_check_branch
      %36 = sbr.rel (0) target = $region17
    $region16: #{tpu_custom_call.1} parent=1 // pred_region
      _
    $region17: #{tpu_custom_call.1} parent=1 // pred_fallthru
      _
    %37 = vsyncpa [#allocation3], 1

</llo_original>
